<compile_context>
chip_gen: v7x
topology: tpu7x:2x2x1
jax: 0.10.0
libtpu: 0.0.40
codegen_flags: <defaults>
</compile_context>

<pallas_src>
import functools

import jax
import jax.numpy as jnp
from jax import lax
from jax.experimental import pallas as pl
from jax.experimental.pallas import tpu as pltpu


def _block_kernel(x_ref, wd_ref, bd_ref, wg_ref, bg_ref, wf_ref, bf_ref,
                  out_ref, *, K, dilation, T, C, Bb, compute_dtype):
    """One grid step = Bb batch elements.

    x_ref  : (Bb, C, T)   input block (also used as the residual)
    wd_ref : (C , K*C)    conv_dilated weight, taps fused (k-major, i-minor)
    bd_ref : (C , 1)
    wg_ref : (2C, K*C)    [conv1_1; conv1_2] weights, taps fused
    bg_ref : (2C, 1)      [b1; b2]
    wf_ref : (C , C)      conv_final (1x1) weight
    bf_ref : (C , 1)
    out_ref: (Bb, C, T)
    """
    left_d = (dilation * (K - 1)) // 2          # 'same' left pad, dilated conv
    left_1 = (K - 1) // 2                       # 'same' left pad, gated convs

    lane = lax.broadcasted_iota(jnp.int32, (C, T), 1)

    def shifted(v, d):
        # s[:, t] = v[:, t + d] if 0 <= t + d < T else 0   (static d)
        # Realised as an XLU lane rotation + VPU select: stays in registers.
        if d == 0:
            return v
        r = pltpu.roll(v, shift=(-d) % T, axis=1)       # r[:, t] = v[:, (t+d) % T]
        mask = (lane + d >= 0) & (lane + d < T)
        return jnp.where(mask, r, jnp.zeros_like(r))

    # Hoist weight / bias loads (and optional bf16 casts) out of the batch loop.
    wd = wd_ref[...].astype(compute_dtype)
    wg = wg_ref[...].astype(compute_dtype)
    wf = wf_ref[...].astype(compute_dtype)
    bd = bd_ref[...]
    bg = bg_ref[...]
    bf = bf_ref[...]

    for b in range(Bb):                          # short static loop, unrolled
        x = x_ref[b]                             # (C, T) float32

        # --- conv_dilated: all K taps in a single MXU matmul ------------------
        stack_d = jnp.concatenate(
            [shifted(x, k * dilation - left_d) for k in range(K)], axis=0)
        xm = jnp.dot(wd, stack_d.astype(compute_dtype),
                     preferred_element_type=jnp.float32) + bd          # (C, T)

        # --- gated convolution: conv1_1 and conv1_2 fused ---------------------
        stack_g = jnp.concatenate(
            [shifted(xm, k - left_1) for k in range(K)], axis=0)
        fg = jnp.dot(wg, stack_g.astype(compute_dtype),
                     preferred_element_type=jnp.float32) + bg          # (2C, T)
        res = jnp.tanh(fg[:C]) * jax.nn.sigmoid(fg[C:])

        # --- conv_final (1x1) + residual --------------------------------------
        out = jnp.dot(wf, res.astype(compute_dtype),
                      preferred_element_type=jnp.float32) + bf + x
        out_ref[b] = out.astype(out_ref.dtype)


def _fuse_taps(w):
    """[C_out, C_in, K] -> [C_out, K*C_in] (k-major, i-minor), lane-dense."""
    co, ci, k = w.shape
    return jnp.transpose(w, (0, 2, 1)).reshape(co, k * ci)


def _pick_batch_block(B, max_bb=8):
    bb = min(B, max_bb)
    while B % bb:
        bb -= 1
    return bb


def advanced_conv_block(x, params, *, kernel_size, dilation,
                        compute_dtype=jnp.float32):
    """x: [B, C, T] float32. params = (wd, bd, w1, b1, w2, b2, wf, bf).

    compute_dtype=jnp.bfloat16 puts bf16 operands on the MXU (f32 accumulate),
    the main throughput lever on v6e/v7x; the default float32 keeps bit-level
    parity with the PyTorch module.
    """
    B, C, T = x.shape
    K = kernel_size
    wd, bd, w1, b1, w2, b2, wf, bf = params

    # Host-side weight plumbing (free, outside the kernel): fused lane-dense layouts.
    wd_f = _fuse_taps(wd)                                     # (C, K*C)
    wg_f = _fuse_taps(jnp.concatenate([w1, w2], axis=0))      # (2C, K*C)
    wf_f = wf.reshape(C, C)                                   # (C, C)
    bd_f = bd.reshape(C, 1)
    bg_f = jnp.concatenate([b1, b2]).reshape(2 * C, 1)        # (2C, 1)
    bf_f = bf.reshape(C, 1)

    Bb = _pick_batch_block(B)

    kernel = functools.partial(_block_kernel, K=K, dilation=dilation,
                               T=T, C=C, Bb=Bb, compute_dtype=compute_dtype)

    grid_spec = pltpu.PrefetchScalarGridSpec(
        num_scalar_prefetch=0,
        grid=(B // Bb,),
        in_specs=[
            pl.BlockSpec((Bb, C, T), lambda b: (b, 0, 0)),    # x (read once)
            pl.BlockSpec((C, K * C), lambda b: (0, 0)),       # conv_dilated W
            pl.BlockSpec((C, 1), lambda b: (0, 0)),
            pl.BlockSpec((2 * C, K * C), lambda b: (0, 0)),   # gated W (stacked)
            pl.BlockSpec((2 * C, 1), lambda b: (0, 0)),
            pl.BlockSpec((C, C), lambda b: (0, 0)),           # conv_final W
            pl.BlockSpec((C, 1), lambda b: (0, 0)),
        ],
        out_specs=pl.BlockSpec((Bb, C, T), lambda b: (b, 0, 0)),
    )

    return pl.pallas_call(
        kernel,
        out_shape=jax.ShapeDtypeStruct((B, C, T), x.dtype),
        grid_spec=grid_spec,
        compiler_params=pltpu.CompilerParams(
            dimension_semantics=("parallel",)),
    )(x, wd_f, bd_f, wg_f, bg_f, wf_f, bf_f)


# ----------------------------- pure-JAX reference -----------------------------
def _conv1d_same(x, w, b, dilation=1):
    K = w.shape[-1]
    total = dilation * (K - 1)
    left = total // 2
    out = lax.conv_general_dilated(
        x, w, window_strides=(1,), padding=[(left, total - left)],
        rhs_dilation=(dilation,), dimension_numbers=("NCH", "OIH", "NCH"))
    return out + b[None, :, None]


def _reference(x, params, *, kernel_size, dilation):
    wd, bd, w1, b1, w2, b2, wf, bf = params
    xm = _conv1d_same(x, wd, bd, dilation=dilation)
    flow = jnp.tanh(_conv1d_same(xm, w1, b1))
    gate = jax.nn.sigmoid(_conv1d_same(xm, w2, b2))
    res = flow * gate
    res = _conv1d_same(res, wf, bf)
    return res + x


if __name__ == "__main__":
    B, C, T = 2, 8, 128
    K, dilation = 3, 2

    key = jax.random.PRNGKey(0)
    ks = jax.random.split(key, 9)
    bound = 1.0 / (C * K) ** 0.5
    bound1 = 1.0 / C ** 0.5
    wd = jax.random.uniform(ks[0], (C, C, K), jnp.float32, -bound, bound)
    bd = jax.random.uniform(ks[1], (C,), jnp.float32, -bound, bound)
    w1 = jax.random.uniform(ks[2], (C, C, K), jnp.float32, -bound, bound)
    b1 = jax.random.uniform(ks[3], (C,), jnp.float32, -bound, bound)
    w2 = jax.random.uniform(ks[4], (C, C, K), jnp.float32, -bound, bound)
    b2 = jax.random.uniform(ks[5], (C,), jnp.float32, -bound, bound)
    wf = jax.random.uniform(ks[6], (C, C, 1), jnp.float32, -bound1, bound1)
    bf = jax.random.uniform(ks[7], (C,), jnp.float32, -bound1, bound1)
    params = (wd, bd, w1, b1, w2, b2, wf, bf)

    x = jax.random.normal(ks[8], (B, C, T), jnp.float32)

    ref = _reference(x, params, kernel_size=K, dilation=dilation)

    # f32 path (default): bit-close to the PyTorch module.
    out = advanced_conv_block(x, params, kernel_size=K, dilation=dilation)
    out = jax.block_until_ready(out)
    assert out.shape == (B, C, T)
    assert jnp.allclose(out, ref, atol=1e-4, rtol=1e-4), "f32 mismatch vs reference"

    # bf16-operand path (v6e/v7x MXU throughput lever), f32 accumulation.
    out_bf16 = advanced_conv_block(x, params, kernel_size=K, dilation=dilation,
                                   compute_dtype=jnp.bfloat16)
    out_bf16 = jax.block_until_ready(out_bf16)
    assert jnp.allclose(out_bf16, ref, atol=1e-1, rtol=1e-1), "bf16 mismatch vs reference"

    print("KERNEL_OK")
</pallas_src>

<mosaic_0001>
module attributes {stable_mosaic.version = 11 : i64} {
  func.func @_block_kernel(%arg0: i32, %arg1: memref<2x8x128xf32, #tpu.memory_space<vmem>>, %arg2: memref<8x24xf32, #tpu.memory_space<vmem>>, %arg3: memref<8x1xf32, #tpu.memory_space<vmem>>, %arg4: memref<16x24xf32, #tpu.memory_space<vmem>>, %arg5: memref<16x1xf32, #tpu.memory_space<vmem>>, %arg6: memref<8x8xf32, #tpu.memory_space<vmem>>, %arg7: memref<8x1xf32, #tpu.memory_space<vmem>>, %arg8: memref<2x8x128xf32, #tpu.memory_space<vmem>>) attributes {dimension_semantics = [#tpu.dimension_semantics<parallel>], iteration_bounds = array<i64: 1>, scalar_prefetch = 0 : i64, scratch_operands = 0 : i64, tpu.core_type = #tpu.core_type<tc>, window_params = [{transform_indices = @transform_0, window_bounds = array<i64: 2, 8, 128>}, {pipeline_mode = #tpu.pipeline_mode<synchronous>, transform_indices = @transform_1, window_bounds = array<i64: 8, 24>}, {pipeline_mode = #tpu.pipeline_mode<synchronous>, transform_indices = @transform_2, window_bounds = array<i64: 8, 1>}, {pipeline_mode = #tpu.pipeline_mode<synchronous>, transform_indices = @transform_3, window_bounds = array<i64: 16, 24>}, {pipeline_mode = #tpu.pipeline_mode<synchronous>, transform_indices = @transform_4, window_bounds = array<i64: 16, 1>}, {pipeline_mode = #tpu.pipeline_mode<synchronous>, transform_indices = @transform_5, window_bounds = array<i64: 8, 8>}, {pipeline_mode = #tpu.pipeline_mode<synchronous>, transform_indices = @transform_6, window_bounds = array<i64: 8, 1>}, {transform_indices = @transform_7, window_bounds = array<i64: 2, 8, 128>}]} {
    %0 = tpu.iota {dimensions = array<i32: 1>} : vector<8x128xi32>
    %c0 = arith.constant 0 : index
    %c0_0 = arith.constant 0 : index
    %1 = vector.load %arg2[%c0, %c0_0] : memref<8x24xf32, #tpu.memory_space<vmem>>, vector<8x24xf32>
    %c0_1 = arith.constant 0 : index
    %c0_2 = arith.constant 0 : index
    %2 = vector.load %arg4[%c0_1, %c0_2] : memref<16x24xf32, #tpu.memory_space<vmem>>, vector<16x24xf32>
    %c0_3 = arith.constant 0 : index
    %c0_4 = arith.constant 0 : index
    %3 = vector.load %arg6[%c0_3, %c0_4] : memref<8x8xf32, #tpu.memory_space<vmem>>, vector<8x8xf32>
    %c0_5 = arith.constant 0 : index
    %c0_6 = arith.constant 0 : index
    %4 = vector.load %arg3[%c0_5, %c0_6] : memref<8x1xf32, #tpu.memory_space<vmem>>, vector<8x1xf32>
    %c0_7 = arith.constant 0 : index
    %c0_8 = arith.constant 0 : index
    %5 = vector.load %arg5[%c0_7, %c0_8] : memref<16x1xf32, #tpu.memory_space<vmem>>, vector<16x1xf32>
    %c0_9 = arith.constant 0 : index
    %c0_10 = arith.constant 0 : index
    %6 = vector.load %arg7[%c0_9, %c0_10] : memref<8x1xf32, #tpu.memory_space<vmem>>, vector<8x1xf32>
    %c0_11 = arith.constant 0 : index
    %c0_12 = arith.constant 0 : index
    %c0_13 = arith.constant 0 : index
    %7 = vector.load %arg1[%c0_11, %c0_12, %c0_13] : memref<2x8x128xf32, #tpu.memory_space<vmem>>, vector<1x8x128xf32>
    %8 = vector.shape_cast %7 : vector<1x8x128xf32> to vector<8x128xf32>
    %c2_i32 = arith.constant 2 : i32
    %9 = tpu.dynamic_rotate %8 by %c2_i32 dim 1 : vector<8x128xf32>, i32 -> vector<8x128xf32>
    %c-2_i32 = arith.constant -2 : i32
    %10 = vector.broadcast %c-2_i32 : i32 to vector<8x128xi32>
    %11 = arith.addi %0, %10 : vector<8x128xi32>
    %c0_i32 = arith.constant 0 : i32
    %12 = vector.broadcast %c0_i32 : i32 to vector<8x128xi32>
    %13 = arith.cmpi sge, %11, %12 : vector<8x128xi32>
    %c-2_i32_14 = arith.constant -2 : i32
    %14 = vector.broadcast %c-2_i32_14 : i32 to vector<8x128xi32>
    %15 = arith.addi %0, %14 : vector<8x128xi32>
    %c128_i32 = arith.constant 128 : i32
    %16 = vector.broadcast %c128_i32 : i32 to vector<8x128xi32>
    %17 = arith.cmpi slt, %15, %16 : vector<8x128xi32>
    %18 = arith.andi %13, %17 : vector<8x128xi1>
    %cst = arith.constant 0.000000e+00 : f32
    %19 = vector.broadcast %cst : f32 to vector<8x128xf32>
    %20 = arith.select %18, %9, %19 : vector<8x128xi1>, vector<8x128xf32>
    %c126_i32 = arith.constant 126 : i32
    %21 = tpu.dynamic_rotate %8 by %c126_i32 dim 1 : vector<8x128xf32>, i32 -> vector<8x128xf32>
    %c2_i32_15 = arith.constant 2 : i32
    %22 = vector.broadcast %c2_i32_15 : i32 to vector<8x128xi32>
    %23 = arith.addi %0, %22 : vector<8x128xi32>
    %c0_i32_16 = arith.constant 0 : i32
    %24 = vector.broadcast %c0_i32_16 : i32 to vector<8x128xi32>
    %25 = arith.cmpi sge, %23, %24 : vector<8x128xi32>
    %c2_i32_17 = arith.constant 2 : i32
    %26 = vector.broadcast %c2_i32_17 : i32 to vector<8x128xi32>
    %27 = arith.addi %0, %26 : vector<8x128xi32>
    %c128_i32_18 = arith.constant 128 : i32
    %28 = vector.broadcast %c128_i32_18 : i32 to vector<8x128xi32>
    %29 = arith.cmpi slt, %27, %28 : vector<8x128xi32>
    %30 = arith.andi %25, %29 : vector<8x128xi1>
    %cst_19 = arith.constant 0.000000e+00 : f32
    %31 = vector.broadcast %cst_19 : f32 to vector<8x128xf32>
    %32 = arith.select %30, %21, %31 : vector<8x128xi1>, vector<8x128xf32>
    %33 = tpu.concatenate %20, %8, %32 in 0 : vector<8x128xf32>, vector<8x128xf32>, vector<8x128xf32> -> vector<24x128xf32>
    %cst_20 = arith.constant dense<0.000000e+00> : vector<8x128xf32>
    %34 = tpu.matmul %1, %33, %cst_20 {dimension_numbers = #tpu.dot_dimension_numbers<[1], [0], [0], [1], [0, 0, 1, 1], [], []>} : vector<8x24xf32>, vector<24x128xf32>, vector<8x128xf32> -> vector<8x128xf32>
    %35 = vector.broadcast %4 : vector<8x1xf32> to vector<8x128xf32>
    %36 = arith.addf %34, %35 : vector<8x128xf32>
    %c1_i32 = arith.constant 1 : i32
    %37 = tpu.dynamic_rotate %36 by %c1_i32 dim 1 : vector<8x128xf32>, i32 -> vector<8x128xf32>
    %c-1_i32 = arith.constant -1 : i32
    %38 = vector.broadcast %c-1_i32 : i32 to vector<8x128xi32>
    %39 = arith.addi %0, %38 : vector<8x128xi32>
    %c0_i32_21 = arith.constant 0 : i32
    %40 = vector.broadcast %c0_i32_21 : i32 to vector<8x128xi32>
    %41 = arith.cmpi sge, %39, %40 : vector<8x128xi32>
    %c-1_i32_22 = arith.constant -1 : i32
    %42 = vector.broadcast %c-1_i32_22 : i32 to vector<8x128xi32>
    %43 = arith.addi %0, %42 : vector<8x128xi32>
    %c128_i32_23 = arith.constant 128 : i32
    %44 = vector.broadcast %c128_i32_23 : i32 to vector<8x128xi32>
    %45 = arith.cmpi slt, %43, %44 : vector<8x128xi32>
    %46 = arith.andi %41, %45 : vector<8x128xi1>
    %cst_24 = arith.constant 0.000000e+00 : f32
    %47 = vector.broadcast %cst_24 : f32 to vector<8x128xf32>
    %48 = arith.select %46, %37, %47 : vector<8x128xi1>, vector<8x128xf32>
    %c127_i32 = arith.constant 127 : i32
    %49 = tpu.dynamic_rotate %36 by %c127_i32 dim 1 : vector<8x128xf32>, i32 -> vector<8x128xf32>
    %c1_i32_25 = arith.constant 1 : i32
    %50 = vector.broadcast %c1_i32_25 : i32 to vector<8x128xi32>
    %51 = arith.addi %0, %50 : vector<8x128xi32>
    %c0_i32_26 = arith.constant 0 : i32
    %52 = vector.broadcast %c0_i32_26 : i32 to vector<8x128xi32>
    %53 = arith.cmpi sge, %51, %52 : vector<8x128xi32>
    %c1_i32_27 = arith.constant 1 : i32
    %54 = vector.broadcast %c1_i32_27 : i32 to vector<8x128xi32>
    %55 = arith.addi %0, %54 : vector<8x128xi32>
    %c128_i32_28 = arith.constant 128 : i32
    %56 = vector.broadcast %c128_i32_28 : i32 to vector<8x128xi32>
    %57 = arith.cmpi slt, %55, %56 : vector<8x128xi32>
    %58 = arith.andi %53, %57 : vector<8x128xi1>
    %cst_29 = arith.constant 0.000000e+00 : f32
    %59 = vector.broadcast %cst_29 : f32 to vector<8x128xf32>
    %60 = arith.select %58, %49, %59 : vector<8x128xi1>, vector<8x128xf32>
    %61 = tpu.concatenate %48, %36, %60 in 0 : vector<8x128xf32>, vector<8x128xf32>, vector<8x128xf32> -> vector<24x128xf32>
    %cst_30 = arith.constant dense<0.000000e+00> : vector<16x128xf32>
    %62 = tpu.matmul %2, %61, %cst_30 {dimension_numbers = #tpu.dot_dimension_numbers<[1], [0], [0], [1], [0, 0, 1, 1], [], []>} : vector<16x24xf32>, vector<24x128xf32>, vector<16x128xf32> -> vector<16x128xf32>
    %63 = vector.broadcast %5 : vector<16x1xf32> to vector<16x128xf32>
    %64 = arith.addf %62, %63 : vector<16x128xf32>
    %65 = vector.extract_strided_slice %64 {offsets = [0, 0], sizes = [8, 128], strides = [1, 1]} : vector<16x128xf32> to vector<8x128xf32>
    %66 = math.tanh %65 : vector<8x128xf32>
    %67 = vector.extract_strided_slice %64 {offsets = [8, 0], sizes = [8, 128], strides = [1, 1]} : vector<16x128xf32> to vector<8x128xf32>
    %68 = arith.negf %67 : vector<8x128xf32>
    %69 = math.exp %68 : vector<8x128xf32>
    %cst_31 = arith.constant 1.000000e+00 : f32
    %70 = vector.broadcast %cst_31 : f32 to vector<8x128xf32>
    %71 = arith.addf %70, %69 : vector<8x128xf32>
    %72 = arith.divf %70, %71 : vector<8x128xf32>
    %73 = arith.mulf %66, %72 : vector<8x128xf32>
    %cst_32 = arith.constant dense<0.000000e+00> : vector<8x128xf32>
    %74 = tpu.matmul %3, %73, %cst_32 {dimension_numbers = #tpu.dot_dimension_numbers<[1], [0], [0], [1], [0, 0, 1, 1], [], []>} : vector<8x8xf32>, vector<8x128xf32>, vector<8x128xf32> -> vector<8x128xf32>
    %75 = vector.broadcast %6 : vector<8x1xf32> to vector<8x128xf32>
    %76 = arith.addf %74, %75 : vector<8x128xf32>
    %77 = arith.addf %76, %8 : vector<8x128xf32>
    %c0_33 = arith.constant 0 : index
    %c0_34 = arith.constant 0 : index
    %c0_35 = arith.constant 0 : index
    %78 = vector.load %arg8[%c0_33, %c0_34, %c0_35] : memref<2x8x128xf32, #tpu.memory_space<vmem>>, vector<1x8x128xf32>
    %79 = vector.shape_cast %78 : vector<1x8x128xf32> to vector<8x128xf32>
    %80 = vector.shape_cast %77 : vector<8x128xf32> to vector<1x8x128xf32>
    tpu.vector_store %arg8[%c0_33, %c0_34, %c0_35], %80 {strides = array<i32>} : memref<2x8x128xf32, #tpu.memory_space<vmem>>, vector<1x8x128xf32>,
    %c1 = arith.constant 1 : index
    %c0_36 = arith.constant 0 : index
    %c0_37 = arith.constant 0 : index
    %81 = vector.load %arg1[%c1, %c0_36, %c0_37] : memref<2x8x128xf32, #tpu.memory_space<vmem>>, vector<1x8x128xf32>
    %82 = vector.shape_cast %81 : vector<1x8x128xf32> to vector<8x128xf32>
    %c2_i32_38 = arith.constant 2 : i32
    %83 = tpu.dynamic_rotate %82 by %c2_i32_38 dim 1 : vector<8x128xf32>, i32 -> vector<8x128xf32>
    %c-2_i32_39 = arith.constant -2 : i32
    %84 = vector.broadcast %c-2_i32_39 : i32 to vector<8x128xi32>
    %85 = arith.addi %0, %84 : vector<8x128xi32>
    %c0_i32_40 = arith.constant 0 : i32
    %86 = vector.broadcast %c0_i32_40 : i32 to vector<8x128xi32>
    %87 = arith.cmpi sge, %85, %86 : vector<8x128xi32>
    %c-2_i32_41 = arith.constant -2 : i32
    %88 = vector.broadcast %c-2_i32_41 : i32 to vector<8x128xi32>
    %89 = arith.addi %0, %88 : vector<8x128xi32>
    %c128_i32_42 = arith.constant 128 : i32
    %90 = vector.broadcast %c128_i32_42 : i32 to vector<8x128xi32>
    %91 = arith.cmpi slt, %89, %90 : vector<8x128xi32>
    %92 = arith.andi %87, %91 : vector<8x128xi1>
    %cst_43 = arith.constant 0.000000e+00 : f32
    %93 = vector.broadcast %cst_43 : f32 to vector<8x128xf32>
    %94 = arith.select %92, %83, %93 : vector<8x128xi1>, vector<8x128xf32>
    %c126_i32_44 = arith.constant 126 : i32
    %95 = tpu.dynamic_rotate %82 by %c126_i32_44 dim 1 : vector<8x128xf32>, i32 -> vector<8x128xf32>
    %c2_i32_45 = arith.constant 2 : i32
    %96 = vector.broadcast %c2_i32_45 : i32 to vector<8x128xi32>
    %97 = arith.addi %0, %96 : vector<8x128xi32>
    %c0_i32_46 = arith.constant 0 : i32
    %98 = vector.broadcast %c0_i32_46 : i32 to vector<8x128xi32>
    %99 = arith.cmpi sge, %97, %98 : vector<8x128xi32>
    %c2_i32_47 = arith.constant 2 : i32
    %100 = vector.broadcast %c2_i32_47 : i32 to vector<8x128xi32>
    %101 = arith.addi %0, %100 : vector<8x128xi32>
    %c128_i32_48 = arith.constant 128 : i32
    %102 = vector.broadcast %c128_i32_48 : i32 to vector<8x128xi32>
    %103 = arith.cmpi slt, %101, %102 : vector<8x128xi32>
    %104 = arith.andi %99, %103 : vector<8x128xi1>
    %cst_49 = arith.constant 0.000000e+00 : f32
    %105 = vector.broadcast %cst_49 : f32 to vector<8x128xf32>
    %106 = arith.select %104, %95, %105 : vector<8x128xi1>, vector<8x128xf32>
    %107 = tpu.concatenate %94, %82, %106 in 0 : vector<8x128xf32>, vector<8x128xf32>, vector<8x128xf32> -> vector<24x128xf32>
    %cst_50 = arith.constant dense<0.000000e+00> : vector<8x128xf32>
    %108 = tpu.matmul %1, %107, %cst_50 {dimension_numbers = #tpu.dot_dimension_numbers<[1], [0], [0], [1], [0, 0, 1, 1], [], []>} : vector<8x24xf32>, vector<24x128xf32>, vector<8x128xf32> -> vector<8x128xf32>
    %109 = vector.broadcast %4 : vector<8x1xf32> to vector<8x128xf32>
    %110 = arith.addf %108, %109 : vector<8x128xf32>
    %c1_i32_51 = arith.constant 1 : i32
    %111 = tpu.dynamic_rotate %110 by %c1_i32_51 dim 1 : vector<8x128xf32>, i32 -> vector<8x128xf32>
    %c-1_i32_52 = arith.constant -1 : i32
    %112 = vector.broadcast %c-1_i32_52 : i32 to vector<8x128xi32>
    %113 = arith.addi %0, %112 : vector<8x128xi32>
    %c0_i32_53 = arith.constant 0 : i32
    %114 = vector.broadcast %c0_i32_53 : i32 to vector<8x128xi32>
    %115 = arith.cmpi sge, %113, %114 : vector<8x128xi32>
    %c-1_i32_54 = arith.constant -1 : i32
    %116 = vector.broadcast %c-1_i32_54 : i32 to vector<8x128xi32>
    %117 = arith.addi %0, %116 : vector<8x128xi32>
    %c128_i32_55 = arith.constant 128 : i32
    %118 = vector.broadcast %c128_i32_55 : i32 to vector<8x128xi32>
    %119 = arith.cmpi slt, %117, %118 : vector<8x128xi32>
    %120 = arith.andi %115, %119 : vector<8x128xi1>
    %cst_56 = arith.constant 0.000000e+00 : f32
    %121 = vector.broadcast %cst_56 : f32 to vector<8x128xf32>
    %122 = arith.select %120, %111, %121 : vector<8x128xi1>, vector<8x128xf32>
    %c127_i32_57 = arith.constant 127 : i32
    %123 = tpu.dynamic_rotate %110 by %c127_i32_57 dim 1 : vector<8x128xf32>, i32 -> vector<8x128xf32>
    %c1_i32_58 = arith.constant 1 : i32
    %124 = vector.broadcast %c1_i32_58 : i32 to vector<8x128xi32>
    %125 = arith.addi %0, %124 : vector<8x128xi32>
    %c0_i32_59 = arith.constant 0 : i32
    %126 = vector.broadcast %c0_i32_59 : i32 to vector<8x128xi32>
    %127 = arith.cmpi sge, %125, %126 : vector<8x128xi32>
    %c1_i32_60 = arith.constant 1 : i32
    %128 = vector.broadcast %c1_i32_60 : i32 to vector<8x128xi32>
    %129 = arith.addi %0, %128 : vector<8x128xi32>
    %c128_i32_61 = arith.constant 128 : i32
    %130 = vector.broadcast %c128_i32_61 : i32 to vector<8x128xi32>
    %131 = arith.cmpi slt, %129, %130 : vector<8x128xi32>
    %132 = arith.andi %127, %131 : vector<8x128xi1>
    %cst_62 = arith.constant 0.000000e+00 : f32
    %133 = vector.broadcast %cst_62 : f32 to vector<8x128xf32>
    %134 = arith.select %132, %123, %133 : vector<8x128xi1>, vector<8x128xf32>
    %135 = tpu.concatenate %122, %110, %134 in 0 : vector<8x128xf32>, vector<8x128xf32>, vector<8x128xf32> -> vector<24x128xf32>
    %cst_63 = arith.constant dense<0.000000e+00> : vector<16x128xf32>
    %136 = tpu.matmul %2, %135, %cst_63 {dimension_numbers = #tpu.dot_dimension_numbers<[1], [0], [0], [1], [0, 0, 1, 1], [], []>} : vector<16x24xf32>, vector<24x128xf32>, vector<16x128xf32> -> vector<16x128xf32>
    %137 = vector.broadcast %5 : vector<16x1xf32> to vector<16x128xf32>
    %138 = arith.addf %136, %137 : vector<16x128xf32>
    %139 = vector.extract_strided_slice %138 {offsets = [0, 0], sizes = [8, 128], strides = [1, 1]} : vector<16x128xf32> to vector<8x128xf32>
    %140 = math.tanh %139 : vector<8x128xf32>
    %141 = vector.extract_strided_slice %138 {offsets = [8, 0], sizes = [8, 128], strides = [1, 1]} : vector<16x128xf32> to vector<8x128xf32>
    %142 = arith.negf %141 : vector<8x128xf32>
    %143 = math.exp %142 : vector<8x128xf32>
    %cst_64 = arith.constant 1.000000e+00 : f32
    %144 = vector.broadcast %cst_64 : f32 to vector<8x128xf32>
    %145 = arith.addf %144, %143 : vector<8x128xf32>
    %146 = arith.divf %144, %145 : vector<8x128xf32>
    %147 = arith.mulf %140, %146 : vector<8x128xf32>
    %cst_65 = arith.constant dense<0.000000e+00> : vector<8x128xf32>
    %148 = tpu.matmul %3, %147, %cst_65 {dimension_numbers = #tpu.dot_dimension_numbers<[1], [0], [0], [1], [0, 0, 1, 1], [], []>} : vector<8x8xf32>, vector<8x128xf32>, vector<8x128xf32> -> vector<8x128xf32>
    %149 = vector.broadcast %6 : vector<8x1xf32> to vector<8x128xf32>
    %150 = arith.addf %148, %149 : vector<8x128xf32>
    %151 = arith.addf %150, %82 : vector<8x128xf32>
    %c1_66 = arith.constant 1 : index
    %c0_67 = arith.constant 0 : index
    %c0_68 = arith.constant 0 : index
    %152 = vector.load %arg8[%c1_66, %c0_67, %c0_68] : memref<2x8x128xf32, #tpu.memory_space<vmem>>, vector<1x8x128xf32>
    %153 = vector.shape_cast %152 : vector<1x8x128xf32> to vector<8x128xf32>
    %154 = vector.shape_cast %151 : vector<8x128xf32> to vector<1x8x128xf32>
    tpu.vector_store %arg8[%c1_66, %c0_67, %c0_68], %154 {strides = array<i32>} : memref<2x8x128xf32, #tpu.memory_space<vmem>>, vector<1x8x128xf32>,
    return
  }
  func.func @transform_0(%arg0: i32) -> (i32, i32, i32) {
    %c0_i32 = arith.constant 0 : i32
    %c0_i32_0 = arith.constant 0 : i32
    %c0_i32_1 = arith.constant 0 : i32
    return %arg0, %c0_i32, %c0_i32_0 : i32, i32, i32
  }
  func.func @transform_1(%arg0: i32) -> (i32, i32) {
    %c0_i32 = arith.constant 0 : i32
    %c0_i32_0 = arith.constant 0 : i32
    %c0_i32_1 = arith.constant 0 : i32
    return %c0_i32, %c0_i32_0 : i32, i32
  }
  func.func @transform_2(%arg0: i32) -> (i32, i32) {
    %c0_i32 = arith.constant 0 : i32
    %c0_i32_0 = arith.constant 0 : i32
    %c0_i32_1 = arith.constant 0 : i32
    return %c0_i32, %c0_i32_0 : i32, i32
  }
  func.func @transform_3(%arg0: i32) -> (i32, i32) {
    %c0_i32 = arith.constant 0 : i32
    %c0_i32_0 = arith.constant 0 : i32
    %c0_i32_1 = arith.constant 0 : i32
    return %c0_i32, %c0_i32_0 : i32, i32
  }
  func.func @transform_4(%arg0: i32) -> (i32, i32) {
    %c0_i32 = arith.constant 0 : i32
    %c0_i32_0 = arith.constant 0 : i32
    %c0_i32_1 = arith.constant 0 : i32
    return %c0_i32, %c0_i32_0 : i32, i32
  }
  func.func @transform_5(%arg0: i32) -> (i32, i32) {
    %c0_i32 = arith.constant 0 : i32
    %c0_i32_0 = arith.constant 0 : i32
    %c0_i32_1 = arith.constant 0 : i32
    return %c0_i32, %c0_i32_0 : i32, i32
  }
  func.func @transform_6(%arg0: i32) -> (i32, i32) {
    %c0_i32 = arith.constant 0 : i32
    %c0_i32_0 = arith.constant 0 : i32
    %c0_i32_1 = arith.constant 0 : i32
    return %c0_i32, %c0_i32_0 : i32, i32
  }
  func.func @transform_7(%arg0: i32) -> (i32, i32, i32) {
    %c0_i32 = arith.constant 0 : i32
    %c0_i32_0 = arith.constant 0 : i32
    %c0_i32_1 = arith.constant 0 : i32
    return %arg0, %c0_i32, %c0_i32_0 : i32, i32, i32
  }
}

</mosaic_0001>

<llo_original>
// kernel: tpu_custom_call.1
$region0: #{tpu_custom_call.1}
  #allocation0 [shape = 'u32[]', space=smem, size = 0x4, offset = 0x4, fixed_abs, tag = 'smem constant byte address 0x4 - core index']
  #allocation1 [shape = 'u32[144,128]{1,0:T(1,128)}', space=vmem, size = 0x12000, scoped, tag = 'internal scratch']
  %s0 = inlined_call_operand.vmem [shape: f32[2,8,128], index: 0, kind: input, shape index: {}]
  %s1 = inlined_call_operand.hbm [shape: f32[8,24], index: 1, kind: input, shape index: {}]
  %s2 = inlined_call_operand.vmem [shape: f32[8,1], index: 2, kind: input, shape index: {}]
  %s3 = inlined_call_operand.vmem [shape: f32[16,24], index: 3, kind: input, shape index: {}]
  %s4 = inlined_call_operand.vmem [shape: f32[16,1], index: 4, kind: input, shape index: {}]
  %s5 = inlined_call_operand.vmem [shape: f32[8,8], index: 5, kind: input, shape index: {}]
  %s6 = inlined_call_operand.vmem [shape: f32[8,1], index: 6, kind: input, shape index: {}]
  %s7 = inlined_call_operand.hbm [shape: f32[2,8,128], index: 7, kind: output, shape index: {}]
  %s8 = sld [smem:[#allocation0]]
  $region42: #{tpu_custom_call.1} parent=0
    _
  %s10 = ssub.s32 1, %s8
  %s11 = scalar_select 0, %s10, %s8
  $region1: #{tpu_custom_call.1} parent=0
    #allocation2 [shape = 'u8[4096]{0}', space=vmem, size = 0x1000, scoped, tag = 'input window, operand 1, single buffered']
    #allocation3 [shape = 's32[1]{0}', space=sflag, size = 0x4, scoped, tag = 'scoped memory for tpu_custom_call.1']
    #allocation4 [shape = 's32[1]{0}', space=sflag, size = 0x4, scoped, tag = 'scoped memory for tpu_custom_call.1']
    #allocation5 [shape = 'u8[8192]{0}', space=vmem, size = 0x2000, scoped, tag = 'output window, operand 0, single buffered']
    %12 = vsyncpa [#allocation3], 0
    %13 = vsyncpa [#allocation4], 0
    // Predicated region
    $region2: #{tpu_custom_call.1} parent=1 // pred_check
      _
    $region3: #{tpu_custom_call.1} parent=1 // pred_check_branch
      %15 = sbr.rel (0) target = $region5
    $region4: #{tpu_custom_call.1} parent=1 // pred_region
      _
    $region5: #{tpu_custom_call.1} parent=1 // pred_fallthru
      _
    // Predicated region
    $region6: #{tpu_custom_call.1} parent=1 // pred_check
      _
    $region7: #{tpu_custom_call.1} parent=1 // pred_check_branch
      %17 = sbr.rel (0) target = $region9
    $region8: #{tpu_custom_call.1} parent=1 // pred_region
      %s19 = ssub.s32 128, 128
      %20 = vsyncadd [#allocation3], %s19
      %s22 = sshll.u32 [#allocation2], 4
      %s23 = int_to_ptr.vmem [resolvable:$true] %s22
      %25 = dma.hbm_to_vmem [thread:$0]  %s1, 128, %s23, [#allocation3]
    $region9: #{tpu_custom_call.1} parent=1 // pred_fallthru
      _
    // Predicated region
    $region10: #{tpu_custom_call.1} parent=1 // pred_check
      _
    $region11: #{tpu_custom_call.1} parent=1 // pred_check_branch
      %27 = sbr.rel (0) target = $region13
    $region12: #{tpu_custom_call.1} parent=1 // pred_region
      _
    $region13: #{tpu_custom_call.1} parent=1 // pred_fallthru
      _
    // Predicated region
    $region14: #{tpu_custom_call.1} parent=1 // pred_check
      _
    $region15: #{tpu_custom_call.1} parent=1 // pred_check_branch
      %29 = sbr.rel (0) target = $region17
    $region16: #{tpu_custom_call.1} parent=1 // pred_region
      _
    $region17: #{tpu_custom_call.1} parent=1 // pred_fallthru
      _
    // Predicated region
    $region18: #{tpu_custom_call.1} parent=1 // pred_check
      _
    $region19: #{tpu_custom_call.1} parent=1 // pred_check_branch
      %31 = sbr.rel (0) target = $region21
    $region20: #{tpu_custom_call.1} parent=1 // pred_region
      _
    $region21: #{tpu_custom_call.1} parent=1 // pred_fallthru
      _
    // Predicated region
    $region22: #{tpu_custom_call.1} parent=1 // pred_check
      _
    $region23: #{tpu_custom_call.1} parent=1 // pred_check_branch
      %33 = sbr.rel (0) target = $region25
    $region24: #{tpu_custom_call.1} parent=1 // pred_region
      _
    $region25: #{tpu_custom_call.1} parent=1 // pred_fallthru
      _
    // Predicated region
    $region26: #{tpu_custom_call.1} parent=1 // pred_check
      _
    $region27: #{tpu_custom_call.1} parent=1 // pred_check_branch
      %35 = sbr.rel (0) target = $region29
    $region28: #{tpu_custom_call.1} parent=1 // pred_region
      _
    $region29: #{tpu_custom_call.1} parent=1 // pred_fallthru
      _
    // Predicated region
    $region30: #{tpu_custom_call.1} parent=1 // pred_check
      _
    $region31: #{tpu_custom_call.1} parent=1 // pred_check_branch
      %37 = sbr.rel (0) target = $region33
    $region32: #{tpu_custom_call.1} parent=1 // pred_region
      %38 = dma.done [#allocation3], 128
    $region33: #{tpu_custom_call.1} parent=1 // pred_fallthru
      _
    %v39 = vlaneseq
    %v40 = vand.u32 %v39, 127
    %v41 = vld [vmem:[#allocation2] sm:$0xff]
    %v42 = vld [vmem:[%s3] sm:$0xff]
    %v43 = vld [vmem:[%s3 + $0x8] sm:$0xff]
    %v44 = vld [vmem:[%s5] sm:$0xff]
    %v45 = vld [vmem:[%s2] sm:$0xff]
    %v46 = vld [vmem:[%s4] sm:$0xff]
    %v47 = vld [vmem:[%s4 + $0x8] sm:$0xff]
    %v48 = vld [vmem:[%s6] sm:$0xff]
    %v49 = vld [vmem:[%s0] sm:$0xff]
    %50 = vrot.lane.b32.xlu0 %v49, 2
    %v51 = vpop.permute.xlu0 %50
    %v52 = vadd.s32 %v40, 4294967294
    %vm53 = vcmp.ge.s32.totalorder %v52, 0
    %vm54 = vcmp.lt.s32.totalorder %v52, 128
    %vm55 = vmand %vm53, %vm54
    %v56 = vsel %vm55, %v51, 0.0
    %57 = vrot.lane.b32.xlu0 %v49, 126
    %v58 = vpop.permute.xlu0 %57
    %v59 = vadd.s32 %v40, 2
    %vm60 = vcmp.ge.s32.totalorder %v59, 0
    %vm61 = vcmp.lt.s32.totalorder %v59, 128
    %vm62 = vmand %vm60, %vm61
    %v63 = vsel %vm62, %v58, 0.0
    %65 = vset.pattern.permute.xlu0 0
    %66 = vperm.xlu0 %65, %v45
    %v67 = vpop.permute.xlu0 %66
    %vm69 = vcmask 195584
    %v71 = vsel %vm69, %v41, 0
    %73 = vmatprep.subr.mxu0 0.0
    %74 = vmatpush1.msra.mxu0 %v56
    %75 = vmatprep.subr.mxu0 0.0
    %76 = vmatpush1.msra.mxu0 %v49
    %77 = vmatprep.subr.mxu0 0.0
    %78 = vmatpush1.msra.mxu0 %v63
    %79 = vmatprep.subr.mxu0 0.0
    %80 = vmatpush1.msra.mxu0 0.0
    %81 = vmatprep.subr.mxu0 0.0
    %82 = vmatpush1.msra.mxu0 0.0
    %83 = vmatprep.subr.mxu0 0.0
    %84 = vmatpush1.msra.mxu0 0.0
    %85 = vmatprep.subr.mxu0 0.0
    %86 = vmatpush1.msra.mxu0 0.0
    %87 = vmatprep.subr.mxu0 0.0
    %88 = vmatpush1.msra.mxu0 0.0
    %89 = vmatprep.subr.mxu0 0.0
    %90 = vmatpush1.msra.mxu0 0.0
    %91 = vmatprep.subr.mxu0 0.0
    %92 = vmatpush1.msra.mxu0 0.0
    %93 = vmatprep.subr.mxu0 0.0
    %94 = vmatpush1.msra.mxu0 0.0
    %95 = vmatprep.subr.mxu0 0.0
    %96 = vmatpush1.msra.mxu0 0.0
    %97 = vmatprep.subr.mxu0 0.0
    %98 = vmatpush1.msra.mxu0 0.0
    %99 = vmatprep.subr.mxu0 0.0
    %100 = vmatpush1.msra.mxu0 0.0
    %101 = vmatprep.subr.mxu0 0.0
    %102 = vmatpush1.msra.mxu0 0.0
    %103 = vmatprep.subr.mxu0 0.0
    %104 = vmatpush1.msra.mxu0 0.0
    %105 = vmatprep.subr.mxu0 0.0
    %106 = vmatpush1.msra.mxu0 0.0
    %107 = vmatprep.subr.mxu0 0.0
    %108 = vmatpush1.msra.mxu0 0.0
    %109 = vmatprep.subr.mxu0 0.0
    %110 = vmatpush1.msra.mxu0 0.0
    %111 = vmatprep.subr.mxu0 0.0
    %112 = vmatpush1.msra.mxu0 0.0
    %113 = vmatprep.subr.mxu0 0.0
    %114 = vmatpush1.msra.mxu0 0.0
    %115 = vmatprep.subr.mxu0 0.0
    %116 = vmatpush1.msra.mxu0 0.0
    %117 = vmatprep.subr.mxu0 0.0
    %118 = vmatpush1.msra.mxu0 0.0
    %119 = vmatprep.subr.mxu0 0.0
    %120 = vmatpush1.msra.mxu0 0.0
    %121 = vmatprep.subr.mxu0 0.0
    %122 = vmatpush1.msra.mxu0 0.0
    %123 = vmatprep.subr.mxu0 0.0
    %124 = vmatpush1.msra.mxu0 0.0
    %125 = vmatprep.subr.mxu0 0.0
    %126 = vmatpush1.msra.mxu0 0.0
    %127 = vmatprep.subr.mxu0 0.0
    %128 = vmatpush1.msra.mxu0 0.0
    %129 = vmatprep.subr.mxu0 0.0
    %130 = vmatpush1.msra.mxu0 0.0
    %131 = vmatprep.subr.mxu0 0.0
    %132 = vmatpush1.msra.mxu0 0.0
    %133 = vmatprep.subr.mxu0 0.0
    %134 = vmatpush1.msra.mxu0 0.0
    %135 = vmatprep.subr.mxu0 0.0
    %136 = vmatpush1.msra.mxu0 0.0
    %137 = vmatprep.mubr.f32.mxu0 0.0
    %138 = vmatmul.mubr.f32.gmra.mrb[0].mxu0 %v71
    %v139 = vpop.f32.mrb[0].mxu0
    %v140 = vadd.f32 %v67, %v139
    %v141 = vpop.f32.mrb[0].mxu0
    %142 = vdwg.mxu0
    %143 = vrot.lane.b32.xlu0 %v140, 1
    %v144 = vpop.permute.xlu0 %143
    %v145 = vadd.s32 %v40, 4294967295
    %vm146 = vcmp.ge.s32.totalorder %v145, 0
    %vm147 = vcmp.lt.s32.totalorder %v145, 128
    %vm148 = vmand %vm146, %vm147
    %v149 = vsel %vm148, %v144, 0.0
    %150 = vrot.lane.b32.xlu0 %v140, 127
    %v151 = vpop.permute.xlu0 %150
    %v152 = vadd.s32 %v40, 1
    %vm153 = vcmp.ge.s32.totalorder %v152, 0
    %vm154 = vcmp.lt.s32.totalorder %v152, 128
    %vm155 = vmand %vm153, %vm154
    %v156 = vsel %vm155, %v151, 0.0
    %158 = vset.pattern.permute.xlu0 0
    %159 = vperm.xlu0 %158, %v46
    %v160 = vpop.permute.xlu0 %159
    %163 = vset.pattern.permute.xlu0 0
    %164 = vperm.xlu0 %163, %v47
    %v165 = vpop.permute.xlu0 %164
    %v168 = vsel %vm69, %v42, 0
    %v171 = vsel %vm69, %v43, 0
    %173 = vmatprep.subr.mxu0 0.0
    %174 = vmatpush1.msra.mxu0 %v149
    %175 = vmatprep.subr.mxu0 0.0
    %176 = vmatpush1.msra.mxu0 %v140
    %177 = vmatprep.subr.mxu0 0.0
    %178 = vmatpush1.msra.mxu0 %v156
    %179 = vmatprep.subr.mxu0 0.0
    %180 = vmatpush1.msra.mxu0 0.0
    %181 = vmatprep.subr.mxu0 0.0
    %182 = vmatpush1.msra.mxu0 0.0
    %183 = vmatprep.subr.mxu0 0.0
    %184 = vmatpush1.msra.mxu0 0.0
    %185 = vmatprep.subr.mxu0 0.0
    %186 = vmatpush1.msra.mxu0 0.0
    %187 = vmatprep.subr.mxu0 0.0
    %188 = vmatpush1.msra.mxu0 0.0
    %189 = vmatprep.subr.mxu0 0.0
    %190 = vmatpush1.msra.mxu0 0.0
    %191 = vmatprep.subr.mxu0 0.0
    %192 = vmatpush1.msra.mxu0 0.0
    %193 = vmatprep.subr.mxu0 0.0
    %194 = vmatpush1.msra.mxu0 0.0
    %195 = vmatprep.subr.mxu0 0.0
    %196 = vmatpush1.msra.mxu0 0.0
    %197 = vmatprep.subr.mxu0 0.0
    %198 = vmatpush1.msra.mxu0 0.0
    %199 = vmatprep.subr.mxu0 0.0
    %200 = vmatpush1.msra.mxu0 0.0
    %201 = vmatprep.subr.mxu0 0.0
    %202 = vmatpush1.msra.mxu0 0.0
    %203 = vmatprep.subr.mxu0 0.0
    %204 = vmatpush1.msra.mxu0 0.0
    %205 = vmatprep.subr.mxu0 0.0
    %206 = vmatpush1.msra.mxu0 0.0
    %207 = vmatprep.subr.mxu0 0.0
    %208 = vmatpush1.msra.mxu0 0.0
    %209 = vmatprep.subr.mxu0 0.0
    %210 = vmatpush1.msra.mxu0 0.0
    %211 = vmatprep.subr.mxu0 0.0
    %212 = vmatpush1.msra.mxu0 0.0
    %213 = vmatprep.subr.mxu0 0.0
    %214 = vmatpush1.msra.mxu0 0.0
    %215 = vmatprep.subr.mxu0 0.0
    %216 = vmatpush1.msra.mxu0 0.0
    %217 = vmatprep.subr.mxu0 0.0
    %218 = vmatpush1.msra.mxu0 0.0
    %219 = vmatprep.subr.mxu0 0.0
    %220 = vmatpush1.msra.mxu0 0.0
    %221 = vmatprep.subr.mxu0 0.0
    %222 = vmatpush1.msra.mxu0 0.0
    %223 = vmatprep.subr.mxu0 0.0
    %224 = vmatpush1.msra.mxu0 0.0
    %225 = vmatprep.subr.mxu0 0.0
    %226 = vmatpush1.msra.mxu0 0.0
    %227 = vmatprep.subr.mxu0 0.0
    %228 = vmatpush1.msra.mxu0 0.0
    %229 = vmatprep.subr.mxu0 0.0
    %230 = vmatpush1.msra.mxu0 0.0
    %231 = vmatprep.subr.mxu0 0.0
    %232 = vmatpush1.msra.mxu0 0.0
    %233 = vmatprep.subr.mxu0 0.0
    %234 = vmatpush1.msra.mxu0 0.0
    %235 = vmatprep.subr.mxu0 0.0
    %236 = vmatpush1.msra.mxu0 0.0
    %237 = vmatprep.mubr.f32.mxu0 0.0
    %238 = vmatmul.mubr.f32.gmra.mrb[0].mxu0 %v168
    %v239 = vpop.f32.mrb[0].mxu0
    %v240 = vadd.f32 %v160, %v239
    %v241 = vpop.f32.mrb[0].mxu0
    %242 = vmatprep.mubr.f32.mxu0 0.0
    %243 = vmatmul.mubr.f32.gmra.mrb[0].mxu0 %v171
    %v244 = vpop.f32.mrb[0].mxu0
    %v245 = vadd.f32 %v165, %v244
    %v246 = vpop.f32.mrb[0].mxu0
    %247 = vdwg.mxu0
    %v248 = vtanh.pop %v240
    %v249 = vxor.u32 %v245, 2147483648
    %v250 = vmul.f32 %v249, 1.442695
    %v251 = vpow.pop %v250
    %v252 = vadd.f32 %v251, 1.0
    %v253 = vrcp.pop %v252
    %v254 = vmul.f32 1.0, %v253
    %v255 = vmul.f32 %v248, %v254
    %257 = vset.pattern.permute.xlu0 0
    %258 = vperm.xlu0 %257, %v48
    %v259 = vpop.permute.xlu0 %258
    %vm261 = vcmask 64512
    %v263 = vsel %vm261, %v44, 0
    %265 = vmatprep.subr.mxu0 0.0
    %266 = vmatpush1.msra.mxu0 %v255
    %267 = vmatprep.subr.mxu0 0.0
    %268 = vmatpush1.msra.mxu0 0.0
    %269 = vmatprep.subr.mxu0 0.0
    %270 = vmatpush1.msra.mxu0 0.0
    %271 = vmatprep.subr.mxu0 0.0
    %272 = vmatpush1.msra.mxu0 0.0
    %273 = vmatprep.subr.mxu0 0.0
    %274 = vmatpush1.msra.mxu0 0.0
    %275 = vmatprep.subr.mxu0 0.0
    %276 = vmatpush1.msra.mxu0 0.0
    %277 = vmatprep.subr.mxu0 0.0
    %278 = vmatpush1.msra.mxu0 0.0
    %279 = vmatprep.subr.mxu0 0.0
    %280 = vmatpush1.msra.mxu0 0.0
    %281 = vmatprep.subr.mxu0 0.0
    %282 = vmatpush1.msra.mxu0 0.0
    %283 = vmatprep.subr.mxu0 0.0
    %284 = vmatpush1.msra.mxu0 0.0
    %285 = vmatprep.subr.mxu0 0.0
    %286 = vmatpush1.msra.mxu0 0.0
    %287 = vmatprep.subr.mxu0 0.0
    %288 = vmatpush1.msra.mxu0 0.0
    %289 = vmatprep.subr.mxu0 0.0
    %290 = vmatpush1.msra.mxu0 0.0
    %291 = vmatprep.subr.mxu0 0.0
    %292 = vmatpush1.msra.mxu0 0.0
    %293 = vmatprep.subr.mxu0 0.0
    %294 = vmatpush1.msra.mxu0 0.0
    %295 = vmatprep.subr.mxu0 0.0
    %296 = vmatpush1.msra.mxu0 0.0
    %297 = vmatprep.subr.mxu0 0.0
    %298 = vmatpush1.msra.mxu0 0.0
    %299 = vmatprep.subr.mxu0 0.0
    %300 = vmatpush1.msra.mxu0 0.0
    %301 = vmatprep.subr.mxu0 0.0
    %302 = vmatpush1.msra.mxu0 0.0
    %303 = vmatprep.subr.mxu0 0.0
    %304 = vmatpush1.msra.mxu0 0.0
    %305 = vmatprep.subr.mxu0 0.0
    %306 = vmatpush1.msra.mxu0 0.0
    %307 = vmatprep.subr.mxu0 0.0
    %308 = vmatpush1.msra.mxu0 0.0
    %309 = vmatprep.subr.mxu0 0.0
    %310 = vmatpush1.msra.mxu0 0.0
    %311 = vmatprep.subr.mxu0 0.0
    %312 = vmatpush1.msra.mxu0 0.0
    %313 = vmatprep.subr.mxu0 0.0
    %314 = vmatpush1.msra.mxu0 0.0
    %315 = vmatprep.subr.mxu0 0.0
    %316 = vmatpush1.msra.mxu0 0.0
    %317 = vmatprep.subr.mxu0 0.0
    %318 = vmatpush1.msra.mxu0 0.0
    %319 = vmatprep.subr.mxu0 0.0
    %320 = vmatpush1.msra.mxu0 0.0
    %321 = vmatprep.subr.mxu0 0.0
    %322 = vmatpush1.msra.mxu0 0.0
    %323 = vmatprep.subr.mxu0 0.0
    %324 = vmatpush1.msra.mxu0 0.0
    %325 = vmatprep.subr.mxu0 0.0
    %326 = vmatpush1.msra.mxu0 0.0
    %327 = vmatprep.subr.mxu0 0.0
    %328 = vmatpush1.msra.mxu0 0.0
    %329 = vmatprep.mubr.f32.mxu0 0.0
    %330 = vmatmul.mubr.f32.gmra.mrb[0].mxu0 %v263
    %v331 = vpop.f32.mrb[0].mxu0
    %v332 = vadd.f32 %v259, %v331
    %v333 = vpop.f32.mrb[0].mxu0
    %334 = vdwg.mxu0
    %v335 = vadd.f32 %v332, %v49
    %336 = vst [vmem:[#allocation5] sm:$0xff] %v335
    %s337 = scalar_lea.vmem %s0, 8
    %v338 = vld [vmem:[%s337] sm:$0xff]
    %339 = vrot.lane.b32.xlu0 %v338, 2
    %v340 = vpop.permute.xlu0 %339
    %v341 = vsel %vm55, %v340, 0.0
    %342 = vrot.lane.b32.xlu0 %v338, 126
    %v343 = vpop.permute.xlu0 %342
    %v344 = vsel %vm62, %v343, 0.0
    %345 = vmatprep.subr.mxu0 0.0
    %346 = vmatpush1.msra.mxu0 %v341
    %347 = vmatprep.subr.mxu0 0.0
    %348 = vmatpush1.msra.mxu0 %v338
    %349 = vmatprep.subr.mxu0 0.0
    %350 = vmatpush1.msra.mxu0 %v344
    %351 = vmatprep.subr.mxu0 0.0
    %352 = vmatpush1.msra.mxu0 0.0
    %353 = vmatprep.subr.mxu0 0.0
    %354 = vmatpush1.msra.mxu0 0.0
    %355 = vmatprep.subr.mxu0 0.0
    %356 = vmatpush1.msra.mxu0 0.0
    %357 = vmatprep.subr.mxu0 0.0
    %358 = vmatpush1.msra.mxu0 0.0
    %359 = vmatprep.subr.mxu0 0.0
    %360 = vmatpush1.msra.mxu0 0.0
    %361 = vmatprep.subr.mxu0 0.0
    %362 = vmatpush1.msra.mxu0 0.0
    %363 = vmatprep.subr.mxu0 0.0
    %364 = vmatpush1.msra.mxu0 0.0
    %365 = vmatprep.subr.mxu0 0.0
    %366 = vmatpush1.msra.mxu0 0.0
    %367 = vmatprep.subr.mxu0 0.0
    %368 = vmatpush1.msra.mxu0 0.0
    %369 = vmatprep.subr.mxu0 0.0
    %370 = vmatpush1.msra.mxu0 0.0
    %371 = vmatprep.subr.mxu0 0.0
    %372 = vmatpush1.msra.mxu0 0.0
    %373 = vmatprep.subr.mxu0 0.0
    %374 = vmatpush1.msra.mxu0 0.0
    %375 = vmatprep.subr.mxu0 0.0
    %376 = vmatpush1.msra.mxu0 0.0
    %377 = vmatprep.subr.mxu0 0.0
    %378 = vmatpush1.msra.mxu0 0.0
    %379 = vmatprep.subr.mxu0 0.0
    %380 = vmatpush1.msra.mxu0 0.0
    %381 = vmatprep.subr.mxu0 0.0
    %382 = vmatpush1.msra.mxu0 0.0
    %383 = vmatprep.subr.mxu0 0.0
    %384 = vmatpush1.msra.mxu0 0.0
    %385 = vmatprep.subr.mxu0 0.0
    %386 = vmatpush1.msra.mxu0 0.0
    %387 = vmatprep.subr.mxu0 0.0
    %388 = vmatpush1.msra.mxu0 0.0
    %389 = vmatprep.subr.mxu0 0.0
    %390 = vmatpush1.msra.mxu0 0.0
    %391 = vmatprep.subr.mxu0 0.0
    %392 = vmatpush1.msra.mxu0 0.0
    %393 = vmatprep.subr.mxu0 0.0
    %394 = vmatpush1.msra.mxu0 0.0
    %395 = vmatprep.subr.mxu0 0.0
    %396 = vmatpush1.msra.mxu0 0.0
    %397 = vmatprep.subr.mxu0 0.0
    %398 = vmatpush1.msra.mxu0 0.0
    %399 = vmatprep.subr.mxu0 0.0
    %400 = vmatpush1.msra.mxu0 0.0
    %401 = vmatprep.subr.mxu0 0.0
    %402 = vmatpush1.msra.mxu0 0.0
    %403 = vmatprep.subr.mxu0 0.0
    %404 = vmatpush1.msra.mxu0 0.0
    %405 = vmatprep.subr.mxu0 0.0
    %406 = vmatpush1.msra.mxu0 0.0
    %407 = vmatprep.subr.mxu0 0.0
    %408 = vmatpush1.msra.mxu0 0.0
    %409 = vmatprep.mubr.f32.mxu0 0.0
    %410 = vmatmul.mubr.f32.gmra.mrb[0].mxu0 %v71
    %v411 = vpop.f32.mrb[0].mxu0
    %v412 = vadd.f32 %v67, %v411
    %v413 = vpop.f32.mrb[0].mxu0
    %414 = vdwg.mxu0
    %415 = vrot.lane.b32.xlu0 %v412, 1
    %v416 = vpop.permute.xlu0 %415
    %v417 = vsel %vm148, %v416, 0.0
    %418 = vrot.lane.b32.xlu0 %v412, 127
    %v419 = vpop.permute.xlu0 %418
    %v420 = vsel %vm155, %v419, 0.0
    %421 = vmatprep.subr.mxu0 0.0
    %422 = vmatpush1.msra.mxu0 %v417
    %423 = vmatprep.subr.mxu0 0.0
    %424 = vmatpush1.msra.mxu0 %v412
    %425 = vmatprep.subr.mxu0 0.0
    %426 = vmatpush1.msra.mxu0 %v420
    %427 = vmatprep.subr.mxu0 0.0
    %428 = vmatpush1.msra.mxu0 0.0
    %429 = vmatprep.subr.mxu0 0.0
    %430 = vmatpush1.msra.mxu0 0.0
    %431 = vmatprep.subr.mxu0 0.0
    %432 = vmatpush1.msra.mxu0 0.0
    %433 = vmatprep.subr.mxu0 0.0
    %434 = vmatpush1.msra.mxu0 0.0
    %435 = vmatprep.subr.mxu0 0.0
    %436 = vmatpush1.msra.mxu0 0.0
    %437 = vmatprep.subr.mxu0 0.0
    %438 = vmatpush1.msra.mxu0 0.0
    %439 = vmatprep.subr.mxu0 0.0
    %440 = vmatpush1.msra.mxu0 0.0
    %441 = vmatprep.subr.mxu0 0.0
    %442 = vmatpush1.msra.mxu0 0.0
    %443 = vmatprep.subr.mxu0 0.0
    %444 = vmatpush1.msra.mxu0 0.0
    %445 = vmatprep.subr.mxu0 0.0
    %446 = vmatpush1.msra.mxu0 0.0
    %447 = vmatprep.subr.mxu0 0.0
    %448 = vmatpush1.msra.mxu0 0.0
    %449 = vmatprep.subr.mxu0 0.0
    %450 = vmatpush1.msra.mxu0 0.0
    %451 = vmatprep.subr.mxu0 0.0
    %452 = vmatpush1.msra.mxu0 0.0
    %453 = vmatprep.subr.mxu0 0.0
    %454 = vmatpush1.msra.mxu0 0.0
    %455 = vmatprep.subr.mxu0 0.0
    %456 = vmatpush1.msra.mxu0 0.0
    %457 = vmatprep.subr.mxu0 0.0
    %458 = vmatpush1.msra.mxu0 0.0
    %459 = vmatprep.subr.mxu0 0.0
    %460 = vmatpush1.msra.mxu0 0.0
    %461 = vmatprep.subr.mxu0 0.0
    %462 = vmatpush1.msra.mxu0 0.0
    %463 = vmatprep.subr.mxu0 0.0
    %464 = vmatpush1.msra.mxu0 0.0
    %465 = vmatprep.subr.mxu0 0.0
    %466 = vmatpush1.msra.mxu0 0.0
    %467 = vmatprep.subr.mxu0 0.0
    %468 = vmatpush1.msra.mxu0 0.0
    %469 = vmatprep.subr.mxu0 0.0
    %470 = vmatpush1.msra.mxu0 0.0
    %471 = vmatprep.subr.mxu0 0.0
    %472 = vmatpush1.msra.mxu0 0.0
    %473 = vmatprep.subr.mxu0 0.0
    %474 = vmatpush1.msra.mxu0 0.0
    %475 = vmatprep.subr.mxu0 0.0
    %476 = vmatpush1.msra.mxu0 0.0
    %477 = vmatprep.subr.mxu0 0.0
    %478 = vmatpush1.msra.mxu0 0.0
    %479 = vmatprep.subr.mxu0 0.0
    %480 = vmatpush1.msra.mxu0 0.0
    %481 = vmatprep.subr.mxu0 0.0
    %482 = vmatpush1.msra.mxu0 0.0
    %483 = vmatprep.subr.mxu0 0.0
    %484 = vmatpush1.msra.mxu0 0.0
    %485 = vmatprep.mubr.f32.mxu0 0.0
    %486 = vmatmul.mubr.f32.gmra.mrb[0].mxu0 %v168
    %v487 = vpop.f32.mrb[0].mxu0
    %v488 = vadd.f32 %v160, %v487
    %v489 = vpop.f32.mrb[0].mxu0
    %490 = vmatprep.mubr.f32.mxu0 0.0
    %491 = vmatmul.mubr.f32.gmra.mrb[0].mxu0 %v171
    %v492 = vpop.f32.mrb[0].mxu0
    %v493 = vadd.f32 %v165, %v492
    %v494 = vpop.f32.mrb[0].mxu0
    %495 = vdwg.mxu0
    %v496 = vtanh.pop %v488
    %v497 = vxor.u32 %v493, 2147483648
    %v498 = vmul.f32 %v497, 1.442695
    %v499 = vpow.pop %v498
    %v500 = vadd.f32 %v499, 1.0
    %v501 = vrcp.pop %v500
    %v502 = vmul.f32 1.0, %v501
    %v503 = vmul.f32 %v496, %v502
    %504 = vmatprep.subr.mxu0 0.0
    %505 = vmatpush1.msra.mxu0 %v503
    %506 = vmatprep.subr.mxu0 0.0
    %507 = vmatpush1.msra.mxu0 0.0
    %508 = vmatprep.subr.mxu0 0.0
    %509 = vmatpush1.msra.mxu0 0.0
    %510 = vmatprep.subr.mxu0 0.0
    %511 = vmatpush1.msra.mxu0 0.0
    %512 = vmatprep.subr.mxu0 0.0
    %513 = vmatpush1.msra.mxu0 0.0
    %514 = vmatprep.subr.mxu0 0.0
    %515 = vmatpush1.msra.mxu0 0.0
    %516 = vmatprep.subr.mxu0 0.0
    %517 = vmatpush1.msra.mxu0 0.0
    %518 = vmatprep.subr.mxu0 0.0
    %519 = vmatpush1.msra.mxu0 0.0
    %520 = vmatprep.subr.mxu0 0.0
    %521 = vmatpush1.msra.mxu0 0.0
    %522 = vmatprep.subr.mxu0 0.0
    %523 = vmatpush1.msra.mxu0 0.0
    %524 = vmatprep.subr.mxu0 0.0
    %525 = vmatpush1.msra.mxu0 0.0
    %526 = vmatprep.subr.mxu0 0.0
    %527 = vmatpush1.msra.mxu0 0.0
    %528 = vmatprep.subr.mxu0 0.0
    %529 = vmatpush1.msra.mxu0 0.0
    %530 = vmatprep.subr.mxu0 0.0
    %531 = vmatpush1.msra.mxu0 0.0
    %532 = vmatprep.subr.mxu0 0.0
    %533 = vmatpush1.msra.mxu0 0.0
    %534 = vmatprep.subr.mxu0 0.0
    %535 = vmatpush1.msra.mxu0 0.0
    %536 = vmatprep.subr.mxu0 0.0
    %537 = vmatpush1.msra.mxu0 0.0
    %538 = vmatprep.subr.mxu0 0.0
    %539 = vmatpush1.msra.mxu0 0.0
    %540 = vmatprep.subr.mxu0 0.0
    %541 = vmatpush1.msra.mxu0 0.0
    %542 = vmatprep.subr.mxu0 0.0
    %543 = vmatpush1.msra.mxu0 0.0
    %544 = vmatprep.subr.mxu0 0.0
    %545 = vmatpush1.msra.mxu0 0.0
    %546 = vmatprep.subr.mxu0 0.0
    %547 = vmatpush1.msra.mxu0 0.0
    %548 = vmatprep.subr.mxu0 0.0
    %549 = vmatpush1.msra.mxu0 0.0
    %550 = vmatprep.subr.mxu0 0.0
    %551 = vmatpush1.msra.mxu0 0.0
    %552 = vmatprep.subr.mxu0 0.0
    %553 = vmatpush1.msra.mxu0 0.0
    %554 = vmatprep.subr.mxu0 0.0
    %555 = vmatpush1.msra.mxu0 0.0
    %556 = vmatprep.subr.mxu0 0.0
    %557 = vmatpush1.msra.mxu0 0.0
    %558 = vmatprep.subr.mxu0 0.0
    %559 = vmatpush1.msra.mxu0 0.0
    %560 = vmatprep.subr.mxu0 0.0
    %561 = vmatpush1.msra.mxu0 0.0
    %562 = vmatprep.subr.mxu0 0.0
    %563 = vmatpush1.msra.mxu0 0.0
    %564 = vmatprep.subr.mxu0 0.0
    %565 = vmatpush1.msra.mxu0 0.0
    %566 = vmatprep.subr.mxu0 0.0
    %567 = vmatpush1.msra.mxu0 0.0
    %568 = vmatprep.mubr.f32.mxu0 0.0
    %569 = vmatmul.mubr.f32.gmra.mrb[0].mxu0 %v263
    %v570 = vpop.f32.mrb[0].mxu0
    %v571 = vadd.f32 %v259, %v570
    %v572 = vpop.f32.mrb[0].mxu0
    %573 = vdwg.mxu0
    %v574 = vadd.f32 %v571, %v338
    %s575 = scalar_lea.vmem [#allocation5], 8
    %576 = vst [vmem:[%s575] sm:$0xff] %v574
    // Predicated region
    $region34: #{tpu_custom_call.1} parent=1 // pred_check
      _
    $region35: #{tpu_custom_call.1} parent=1 // pred_check_branch
      %578 = sbr.rel (0) target = $region37
    $region36: #{tpu_custom_call.1} parent=1 // pred_region
      %s580 = ssub.s32 256, 256
      %581 = vsyncadd [#allocation4], %s580
      %s582 = sshll.u32 [#allocation5], 4
      %s583 = int_to_ptr.vmem [resolvable:$true] %s582
      %588 = dma.vmem_to_hbm [thread:$0]  %s583, 256, %s7, [#allocation4], 128, 128, 8
    $region37: #{tpu_custom_call.1} parent=1 // pred_fallthru
      _
    // Predicated region
    $region38: #{tpu_custom_call.1} parent=1 // pred_check
      _
    $region39: #{tpu_custom_call.1} parent=1 // pred_check_branch
      %590 = sbr.rel (0) target = $region41
    $region40: #{tpu_custom_call.1} parent=1 // pred_region
      %591 = dma.done [#allocation4], 256
    $region41: #{tpu_custom_call.1} parent=1 // pred_fallthru
      _
    %592 = vsyncpa [#allocation3], 1
    %593 = vsyncpa [#allocation4], 1

</llo_original>
